<compile_context>
chip_gen: v7x
topology: tpu7x:2x2x1
jax: 0.10.0
libtpu: 0.0.40
codegen_flags: <defaults>
</compile_context>

<pallas_src>
from functools import partial

import jax
import jax.numpy as jnp
from jax import lax
from jax.experimental import pallas as pl
from jax.experimental.pallas import tpu as pltpu


def bpr_kernel(
    u_idx_ref, p_idx_ref, n_idx_ref,   # (B,) int32 scalar-prefetch refs (SMEM)
    user_hbm, item_hbm,                # (n_users, F) / (n_items, F) in HBM (ANY)
    o_ref,                             # (1, 1) float32 per-tile partial (SMEM)
    ubuf, pbuf, nbuf,                  # (tile_b, F) float32 VMEM gather buffers
    sems,                              # DMA semaphores, one per gathered slab
    *, reg, tile_b, valid_b, apply_mask,
):
    i = pl.program_id(0)
    base = i * tile_b
    last = valid_b - 1

    # ---- Fused gather: one row DMA per (user, pos, neg) index. ------------
    # Issue every DMA of the tile before waiting so they all overlap.
    @pl.loop(0, tile_b)
    def _(r):
        g = jnp.minimum(base + r, last)          # clamp OOB tail rows (masked below)
        uid = u_idx_ref[g]
        pid = p_idx_ref[g]
        nid = n_idx_ref[g]
        pltpu.make_async_copy(user_hbm.at[pl.ds(uid, 1), :],
                              ubuf.at[pl.ds(r, 1), :], sems.at[0]).start()
        pltpu.make_async_copy(item_hbm.at[pl.ds(pid, 1), :],
                              pbuf.at[pl.ds(r, 1), :], sems.at[1]).start()
        pltpu.make_async_copy(item_hbm.at[pl.ds(nid, 1), :],
                              nbuf.at[pl.ds(r, 1), :], sems.at[2]).start()

    # Matched-size waits (one per started copy): the last wait on each
    # semaphore can only complete once every row DMA of that slab has landed.
    @pl.loop(0, tile_b)
    def _(r):
        pltpu.make_async_copy(user_hbm.at[pl.ds(0, 1), :],
                              ubuf.at[pl.ds(r, 1), :], sems.at[0]).wait()
        pltpu.make_async_copy(item_hbm.at[pl.ds(0, 1), :],
                              pbuf.at[pl.ds(r, 1), :], sems.at[1]).wait()
        pltpu.make_async_copy(item_hbm.at[pl.ds(0, 1), :],
                              nbuf.at[pl.ds(r, 1), :], sems.at[2]).wait()

    # ---- Compute: loss tile partial. ---------------------------------------
    u = ubuf[...]
    p = pbuf[...]
    n = nbuf[...]

    # r_uij = sum(u * (p - n), -1): one multiply + one lane reduction.
    r_uij = jnp.sum(u * (p - n), axis=-1, keepdims=True)            # (tile_b, 1)

    # Stable log(sigmoid(x)) = min(x, 0) - log(1 + exp(-|x|)).
    logsig = jnp.minimum(r_uij, 0.0) - jnp.log(1.0 + jnp.exp(-jnp.abs(r_uij)))

    # Per-row L2 term (must be per-row so the tail mask also gates it).
    reg_row = jnp.sum(u * u + p * p + n * n, axis=-1, keepdims=True)

    contrib = logsig - reg * reg_row                                 # (tile_b, 1)
    if apply_mask:
        row = base + lax.broadcasted_iota(jnp.int32, (tile_b, 1), 0)
        contrib = jnp.where(row < valid_b, contrib, 0.0)

    # Per-tile partial of sum(losses - regs); negate / mean happen outside.
    o_ref[0, 0] = jnp.sum(contrib)


def _round_up(x, m):
    return ((x + m - 1) // m) * m


def bpr_forward(user_emb, item_emb, triplets, *, reg, mean, tile_b=None):
    """user_emb: (n_users, F), item_emb: (n_items, F), triplets: (B, 3) int."""
    user_emb = user_emb.astype(jnp.float32)
    item_emb = item_emb.astype(jnp.float32)
    u_idx = triplets[:, 0].astype(jnp.int32)
    p_idx = triplets[:, 1].astype(jnp.int32)
    n_idx = triplets[:, 2].astype(jnp.int32)

    B = int(u_idx.shape[0])
    F = int(user_emb.shape[1])

    if tile_b is None:
        # Cap by bytes: 3 gather buffers (no slab double-buffering) under
        # ~6 MiB, leaving headroom for compiler temporaries even on v5e's
        # 16 MiB default scoped VMEM.  Also keep >= 2 tiles for a moderate B
        # so the "parallel" axis can feed both v7x TensorCores.
        vmem_budget = 6 * 1024 * 1024
        max_rows = max(8, vmem_budget // (3 * F * 4))
        want = _round_up(pl.cdiv(B, 2), 8) if B > 8 else 8
        tile_b = min(max_rows, want)
    tile_b = max(8, (int(tile_b) // 8) * 8)
    num_tiles = pl.cdiv(B, tile_b)

    kernel = partial(
        bpr_kernel,
        reg=float(reg),
        tile_b=int(tile_b),
        valid_b=B,
        apply_mask=(B % tile_b != 0),
    )

    cost = pl.CostEstimate(
        flops=int(B * (5 * F + 10)),
        transcendentals=int(2 * B),
        bytes_accessed=int(3 * B * F * 4 + 3 * B * 4 + num_tiles * 4),
    )

    partials = pl.pallas_call(
        kernel,
        out_shape=jax.ShapeDtypeStruct((num_tiles, 1), jnp.float32),
        grid_spec=pltpu.PrefetchScalarGridSpec(
            num_scalar_prefetch=3,               # u_idx, p_idx, n_idx -> SMEM
            grid=(num_tiles,),
            in_specs=[
                pl.BlockSpec(memory_space=pl.ANY),   # user_emb stays in HBM
                pl.BlockSpec(memory_space=pl.ANY),   # item_emb stays in HBM
            ],
            out_specs=pl.BlockSpec(
                (1, 1),
                lambda i, u_idx_ref, p_idx_ref, n_idx_ref: (i, 0),
                memory_space=pltpu.MemorySpace.SMEM,
            ),
            scratch_shapes=[
                pltpu.VMEM((tile_b, F), jnp.float32),
                pltpu.VMEM((tile_b, F), jnp.float32),
                pltpu.VMEM((tile_b, F), jnp.float32),
                pltpu.SemaphoreType.DMA((3,)),
            ],
        ),
        compiler_params=pltpu.CompilerParams(
            dimension_semantics=("parallel",),
        ),
        cost_estimate=cost,
    )(u_idx, p_idx, n_idx, user_emb, item_emb)

    total = -jnp.sum(partials)
    if mean:
        total = total / B
    return total


if __name__ == "__main__":
    # Small synthetic config (mirrors args.f, args.r, args.n_users, args.n_items).
    n_users, n_items, feature_dim = 10, 20, 32
    reg = 0.01

    key = jax.random.PRNGKey(0)
    ku, ki, kt = jax.random.split(key, 3)

    # nn.Embedding default init: N(0, 1).
    user_emb = jax.random.normal(ku, (n_users, feature_dim), dtype=jnp.float32)
    item_emb = jax.random.normal(ki, (n_items, feature_dim), dtype=jnp.float32)

    def make_triplets(k, batch):
        k1, k2, k3 = jax.random.split(k, 3)
        u = jax.random.randint(k1, (batch, 1), 0, n_users, dtype=jnp.int32)
        p = jax.random.randint(k2, (batch, 1), 0, n_items, dtype=jnp.int32)
        n = jax.random.randint(k3, (batch, 1), 0, n_items, dtype=jnp.int32)
        return jnp.concatenate([u, p, n], axis=1)

    def reference(trip, mean):
        users = jnp.take(user_emb, trip[:, 0], axis=0)
        pos = jnp.take(item_emb, trip[:, 1], axis=0)
        neg = jnp.take(item_emb, trip[:, 2], axis=0)
        r_uij = jnp.sum(users * pos, -1) - jnp.sum(users * neg, -1)
        losses = jax.nn.log_sigmoid(r_uij)
        regs = reg * (
            jnp.sum(users**2, -1) + jnp.sum(pos**2, -1) + jnp.sum(neg**2, -1)
        )
        loss = losses - regs
        return -jnp.mean(loss) if mean else -jnp.sum(loss)

    # Case 1: batch divisible by the tile size (single tile, no masking), mean=True.
    trip1 = make_triplets(kt, 8)
    out1 = bpr_forward(user_emb, item_emb, trip1, reg=reg, mean=True)
    jax.block_until_ready(out1)
    ref1 = reference(trip1, mean=True)
    assert jnp.allclose(out1, ref1, rtol=1e-5, atol=1e-5), (out1, ref1)

    # Case 2: ragged batch -> 2-tile "parallel" grid with tail masking, mean=False.
    trip2 = make_triplets(jax.random.fold_in(kt, 1), 13)
    out2 = bpr_forward(user_emb, item_emb, trip2, reg=reg, mean=False)
    jax.block_until_ready(out2)
    ref2 = reference(trip2, mean=False)
    assert jnp.allclose(out2, ref2, rtol=1e-5, atol=1e-5), (out2, ref2)

    print("KERNEL_OK")
</pallas_src>

<mosaic_0001>
module attributes {stable_mosaic.version = 11 : i64} {
  func.func @bpr_kernel(%arg0: i32, %arg1: memref<8xi32, #tpu.memory_space<smem>>, %arg2: memref<8xi32, #tpu.memory_space<smem>>, %arg3: memref<8xi32, #tpu.memory_space<smem>>, %arg4: memref<10x32xf32, #tpu.memory_space<any>>, %arg5: memref<20x32xf32, #tpu.memory_space<any>>, %arg6: memref<1x1xf32, #tpu.memory_space<smem>>, %arg7: memref<8x32xf32, #tpu.memory_space<vmem>>, %arg8: memref<8x32xf32, #tpu.memory_space<vmem>>, %arg9: memref<8x32xf32, #tpu.memory_space<vmem>>, %arg10: memref<3x!tpu.dma_semaphore, #tpu.memory_space<semaphore_mem>>) attributes {dimension_semantics = [#tpu.dimension_semantics<parallel>], iteration_bounds = array<i64: 1>, scalar_prefetch = 3 : i64, scratch_operands = 4 : i64, tpu.core_type = #tpu.core_type<tc>, window_params = [{}, {}, {transform_indices = @transform_2, window_bounds = array<i64: 1, 1>}]} {
    %c8_i32 = arith.constant 8 : i32
    %0 = arith.muli %arg0, %c8_i32 : i32
    %c0_i32 = arith.constant 0 : i32
    %c8_i32_0 = arith.constant 8 : i32
    %1 = arith.addi %c0_i32, %c8_i32_0 : i32
    %c1_i32 = arith.constant 1 : i32
    scf.for %arg11 = %c0_i32 to %1 step %c1_i32  : i32 {
      %c1_i32_19 = arith.constant 1 : i32
      %35 = arith.muli %arg11, %c1_i32_19 : i32
      %c0_i32_20 = arith.constant 0 : i32
      %36 = arith.addi %c0_i32_20, %35 : i32
      %37 = arith.addi %0, %36 : i32
      %c7_i32 = arith.constant 7 : i32
      %38 = arith.minsi %37, %c7_i32 : i32
      %39 = arith.index_cast %38 : i32 to index
      %40 = memref.load %arg1[%39] : memref<8xi32, #tpu.memory_space<smem>>
      %41 = arith.index_cast %38 : i32 to index
      %42 = memref.load %arg2[%41] : memref<8xi32, #tpu.memory_space<smem>>
      %43 = arith.index_cast %38 : i32 to index
      %44 = memref.load %arg3[%43] : memref<8xi32, #tpu.memory_space<smem>>
      %c0_i32_21 = arith.constant 0 : i32
      %c0_i32_22 = arith.constant 0 : i32
      %45 = tpu.memref_slice %arg4[%40, %c0_i32_22] : memref<10x32xf32, #tpu.memory_space<any>> -> memref<1x32xf32, #tpu.memory_space<any>>
      %c0_i32_23 = arith.constant 0 : i32
      %46 = tpu.memref_slice %arg7[%36, %c0_i32_23] : memref<8x32xf32, #tpu.memory_space<vmem>> -> memref<1x32xf32, #tpu.memory_space<vmem>>
      %47 = tpu.memref_slice %arg10[%c0_i32_21] : memref<3x!tpu.dma_semaphore, #tpu.memory_space<semaphore_mem>> -> memref<1x!tpu.dma_semaphore, #tpu.memory_space<semaphore_mem>>
      %48 = tpu.memref_squeeze %47 : memref<1x!tpu.dma_semaphore, #tpu.memory_space<semaphore_mem>> -> memref<!tpu.dma_semaphore, #tpu.memory_space<semaphore_mem>>
      tpu.enqueue_dma source(%45 : memref<1x32xf32, #tpu.memory_space<any>>) target(%46 : memref<1x32xf32, #tpu.memory_space<vmem>>) target_semaphore(%48 : memref<!tpu.dma_semaphore, #tpu.memory_space<semaphore_mem>>)
      %c1_i32_24 = arith.constant 1 : i32
      %c0_i32_25 = arith.constant 0 : i32
      %49 = tpu.memref_slice %arg5[%42, %c0_i32_25] : memref<20x32xf32, #tpu.memory_space<any>> -> memref<1x32xf32, #tpu.memory_space<any>>
      %c0_i32_26 = arith.constant 0 : i32
      %50 = tpu.memref_slice %arg8[%36, %c0_i32_26] : memref<8x32xf32, #tpu.memory_space<vmem>> -> memref<1x32xf32, #tpu.memory_space<vmem>>
      %51 = tpu.memref_slice %arg10[%c1_i32_24] : memref<3x!tpu.dma_semaphore, #tpu.memory_space<semaphore_mem>> -> memref<1x!tpu.dma_semaphore, #tpu.memory_space<semaphore_mem>>
      %52 = tpu.memref_squeeze %51 : memref<1x!tpu.dma_semaphore, #tpu.memory_space<semaphore_mem>> -> memref<!tpu.dma_semaphore, #tpu.memory_space<semaphore_mem>>
      tpu.enqueue_dma source(%49 : memref<1x32xf32, #tpu.memory_space<any>>) target(%50 : memref<1x32xf32, #tpu.memory_space<vmem>>) target_semaphore(%52 : memref<!tpu.dma_semaphore, #tpu.memory_space<semaphore_mem>>)
      %c2_i32 = arith.constant 2 : i32
      %c0_i32_27 = arith.constant 0 : i32
      %53 = tpu.memref_slice %arg5[%44, %c0_i32_27] : memref<20x32xf32, #tpu.memory_space<any>> -> memref<1x32xf32, #tpu.memory_space<any>>
      %c0_i32_28 = arith.constant 0 : i32
      %54 = tpu.memref_slice %arg9[%36, %c0_i32_28] : memref<8x32xf32, #tpu.memory_space<vmem>> -> memref<1x32xf32, #tpu.memory_space<vmem>>
      %55 = tpu.memref_slice %arg10[%c2_i32] : memref<3x!tpu.dma_semaphore, #tpu.memory_space<semaphore_mem>> -> memref<1x!tpu.dma_semaphore, #tpu.memory_space<semaphore_mem>>
      %56 = tpu.memref_squeeze %55 : memref<1x!tpu.dma_semaphore, #tpu.memory_space<semaphore_mem>> -> memref<!tpu.dma_semaphore, #tpu.memory_space<semaphore_mem>>
      tpu.enqueue_dma source(%53 : memref<1x32xf32, #tpu.memory_space<any>>) target(%54 : memref<1x32xf32, #tpu.memory_space<vmem>>) target_semaphore(%56 : memref<!tpu.dma_semaphore, #tpu.memory_space<semaphore_mem>>)
    }
    %c8_i32_1 = arith.constant 8 : i32
    %c0_i32_2 = arith.constant 0 : i32
    %c8_i32_3 = arith.constant 8 : i32
    %2 = arith.addi %c0_i32_2, %c8_i32_3 : i32
    %c1_i32_4 = arith.constant 1 : i32
    scf.for %arg11 = %c0_i32_2 to %2 step %c1_i32_4  : i32 {
      %c1_i32_19 = arith.constant 1 : i32
      %35 = arith.muli %arg11, %c1_i32_19 : i32
      %c0_i32_20 = arith.constant 0 : i32
      %36 = arith.addi %c0_i32_20, %35 : i32
      %c0_i32_21 = arith.constant 0 : i32
      %c0_i32_22 = arith.constant 0 : i32
      %c0_i32_23 = arith.constant 0 : i32
      %37 = tpu.memref_slice %arg4[%c0_i32_22, %c0_i32_23] : memref<10x32xf32, #tpu.memory_space<any>> -> memref<1x32xf32, #tpu.memory_space<any>>
      %c0_i32_24 = arith.constant 0 : i32
      %38 = tpu.memref_slice %arg7[%36, %c0_i32_24] : memref<8x32xf32, #tpu.memory_space<vmem>> -> memref<1x32xf32, #tpu.memory_space<vmem>>
      %39 = tpu.memref_slice %arg10[%c0_i32_21] : memref<3x!tpu.dma_semaphore, #tpu.memory_space<semaphore_mem>> -> memref<1x!tpu.dma_semaphore, #tpu.memory_space<semaphore_mem>>
      %40 = tpu.memref_squeeze %39 : memref<1x!tpu.dma_semaphore, #tpu.memory_space<semaphore_mem>> -> memref<!tpu.dma_semaphore, #tpu.memory_space<semaphore_mem>>
      tpu.wait_dma2 semaphore(%40 : memref<!tpu.dma_semaphore, #tpu.memory_space<semaphore_mem>>) src(%37 : memref<1x32xf32, #tpu.memory_space<any>>) dst(%38 : memref<1x32xf32, #tpu.memory_space<vmem>>)
      %c1_i32_25 = arith.constant 1 : i32
      %c0_i32_26 = arith.constant 0 : i32
      %c0_i32_27 = arith.constant 0 : i32
      %41 = tpu.memref_slice %arg5[%c0_i32_26, %c0_i32_27] : memref<20x32xf32, #tpu.memory_space<any>> -> memref<1x32xf32, #tpu.memory_space<any>>
      %c0_i32_28 = arith.constant 0 : i32
      %42 = tpu.memref_slice %arg8[%36, %c0_i32_28] : memref<8x32xf32, #tpu.memory_space<vmem>> -> memref<1x32xf32, #tpu.memory_space<vmem>>
      %43 = tpu.memref_slice %arg10[%c1_i32_25] : memref<3x!tpu.dma_semaphore, #tpu.memory_space<semaphore_mem>> -> memref<1x!tpu.dma_semaphore, #tpu.memory_space<semaphore_mem>>
      %44 = tpu.memref_squeeze %43 : memref<1x!tpu.dma_semaphore, #tpu.memory_space<semaphore_mem>> -> memref<!tpu.dma_semaphore, #tpu.memory_space<semaphore_mem>>
      tpu.wait_dma2 semaphore(%44 : memref<!tpu.dma_semaphore, #tpu.memory_space<semaphore_mem>>) src(%41 : memref<1x32xf32, #tpu.memory_space<any>>) dst(%42 : memref<1x32xf32, #tpu.memory_space<vmem>>)
      %c2_i32 = arith.constant 2 : i32
      %c0_i32_29 = arith.constant 0 : i32
      %c0_i32_30 = arith.constant 0 : i32
      %45 = tpu.memref_slice %arg5[%c0_i32_29, %c0_i32_30] : memref<20x32xf32, #tpu.memory_space<any>> -> memref<1x32xf32, #tpu.memory_space<any>>
      %c0_i32_31 = arith.constant 0 : i32
      %46 = tpu.memref_slice %arg9[%36, %c0_i32_31] : memref<8x32xf32, #tpu.memory_space<vmem>> -> memref<1x32xf32, #tpu.memory_space<vmem>>
      %47 = tpu.memref_slice %arg10[%c2_i32] : memref<3x!tpu.dma_semaphore, #tpu.memory_space<semaphore_mem>> -> memref<1x!tpu.dma_semaphore, #tpu.memory_space<semaphore_mem>>
      %48 = tpu.memref_squeeze %47 : memref<1x!tpu.dma_semaphore, #tpu.memory_space<semaphore_mem>> -> memref<!tpu.dma_semaphore, #tpu.memory_space<semaphore_mem>>
      tpu.wait_dma2 semaphore(%48 : memref<!tpu.dma_semaphore, #tpu.memory_space<semaphore_mem>>) src(%45 : memref<1x32xf32, #tpu.memory_space<any>>) dst(%46 : memref<1x32xf32, #tpu.memory_space<vmem>>)
    }
    %c8_i32_5 = arith.constant 8 : i32
    %c0 = arith.constant 0 : index
    %c0_6 = arith.constant 0 : index
    %3 = vector.load %arg7[%c0, %c0_6] : memref<8x32xf32, #tpu.memory_space<vmem>>, vector<8x32xf32>
    %c0_7 = arith.constant 0 : index
    %c0_8 = arith.constant 0 : index
    %4 = vector.load %arg8[%c0_7, %c0_8] : memref<8x32xf32, #tpu.memory_space<vmem>>, vector<8x32xf32>
    %c0_9 = arith.constant 0 : index
    %c0_10 = arith.constant 0 : index
    %5 = vector.load %arg9[%c0_9, %c0_10] : memref<8x32xf32, #tpu.memory_space<vmem>>, vector<8x32xf32>
    %6 = arith.subf %4, %5 : vector<8x32xf32>
    %7 = arith.mulf %3, %6 : vector<8x32xf32>
    %cst = arith.constant dense<0.000000e+00> : vector<8xf32>
    %8 = vector.multi_reduction <add>, %7, %cst [1] : vector<8x32xf32> to vector<8xf32>
    %9 = vector.shape_cast %8 : vector<8xf32> to vector<8x1xf32>
    %cst_11 = arith.constant 0.000000e+00 : f32
    %10 = vector.broadcast %cst_11 : f32 to vector<8x1xf32>
    %11 = arith.minimumf %9, %10 : vector<8x1xf32>
    %12 = math.absf %9 : vector<8x1xf32>
    %cst_12 = arith.constant 0.000000e+00 : f32
    %13 = vector.broadcast %cst_12 : f32 to vector<8x1xf32>
    %14 = arith.subf %13, %12 : vector<8x1xf32>
    %15 = math.exp %14 : vector<8x1xf32>
    %cst_13 = arith.constant 1.000000e+00 : f32
    %16 = vector.broadcast %cst_13 : f32 to vector<8x1xf32>
    %17 = arith.addf %16, %15 : vector<8x1xf32>
    %18 = math.log %17 : vector<8x1xf32>
    %19 = arith.subf %11, %18 : vector<8x1xf32>
    %20 = arith.mulf %3, %3 : vector<8x32xf32>
    %21 = arith.mulf %4, %4 : vector<8x32xf32>
    %22 = arith.addf %20, %21 : vector<8x32xf32>
    %23 = arith.mulf %5, %5 : vector<8x32xf32>
    %24 = arith.addf %22, %23 : vector<8x32xf32>
    %cst_14 = arith.constant dense<0.000000e+00> : vector<8xf32>
    %25 = vector.multi_reduction <add>, %24, %cst_14 [1] : vector<8x32xf32> to vector<8xf32>
    %26 = vector.shape_cast %25 : vector<8xf32> to vector<8x1xf32>
    %cst_15 = arith.constant 0.00999999977 : f32
    %27 = vector.broadcast %cst_15 : f32 to vector<8x1xf32>
    %28 = arith.mulf %27, %26 : vector<8x1xf32>
    %29 = arith.subf %19, %28 : vector<8x1xf32>
    %30 = vector.shape_cast %29 : vector<8x1xf32> to vector<1x8x1xf32>
    %cst_16 = arith.constant dense<0.000000e+00> : vector<1xf32>
    %31 = vector.multi_reduction <add>, %30, %cst_16 [1, 2] : vector<1x8x1xf32> to vector<1xf32>
    %32 = vector.shape_cast %31 : vector<1xf32> to vector<1x1x1xf32>
    %33 = vector.extract %32[0, 0, 0] : f32 from vector<1x1x1xf32>
    %c0_17 = arith.constant 0 : index
    %c0_18 = arith.constant 0 : index
    %34 = memref.load %arg6[%c0_17, %c0_18] : memref<1x1xf32, #tpu.memory_space<smem>>
    memref.store %33, %arg6[%c0_17, %c0_18] : memref<1x1xf32, #tpu.memory_space<smem>>
    return
  }
  func.func @transform_2(%arg0: i32, %arg1: memref<8xi32, #tpu.memory_space<smem>>, %arg2: memref<8xi32, #tpu.memory_space<smem>>, %arg3: memref<8xi32, #tpu.memory_space<smem>>) -> (i32, i32) {
    %c0_i32 = arith.constant 0 : i32
    %c0_i32_0 = arith.constant 0 : i32
    return %arg0, %c0_i32 : i32, i32
  }
}

</mosaic_0001>

<llo_original>
// kernel: tpu_custom_call.1
$region0: #{tpu_custom_call.1}
  #allocation0 [shape = 'u32[]', space=smem, size = 0x4, offset = 0x4, fixed_abs, tag = 'smem constant byte address 0x4 - core index']
  #allocation1 [shape = 'u32[144,128]{1,0:T(1,128)}', space=vmem, size = 0x12000, scoped, tag = 'internal scratch']
  #allocation2 [shape = 'f32[8,32]{1,0:T(8,128)}', space=vmem, size = 0x1000, scoped, tag = 'scratch operand']
  #allocation3 [shape = 'f32[8,32]{1,0:T(8,128)}', space=vmem, size = 0x1000, scoped, tag = 'scratch operand']
  #allocation4 [shape = 'f32[8,32]{1,0:T(8,128)}', space=vmem, size = 0x1000, scoped, tag = 'scratch operand']
  #allocation5 [shape = 's32[3]{0}', space=sflag, size = 0xc, scoped, tag = 'scratch operand']
  #allocation6 [shape = 's32[1]{0}', space=sflag, size = 0x4, scoped, tag = 'scoped memory for tpu_custom_call.1']
  #allocation7 [shape = 'u8[512]{0}', space=smem, size = 0x200, scoped, tag = 'prefetched SMEM operand 0']
  #allocation8 [shape = 'u8[512]{0}', space=smem, size = 0x200, scoped, tag = 'prefetched SMEM operand 1']
  #allocation9 [shape = 'u8[512]{0}', space=smem, size = 0x200, scoped, tag = 'prefetched SMEM operand 2']
  #allocation12 [shape = 's32[]', space=sflag, size = 0x4, offset = 0, fixed_abs, tag = 'sflag constant byte address 0x0 - dummy sync flag']
  #allocation13 [shape = 's32[]', space=sflag, size = 0x4, offset = 0, fixed_abs, tag = 'sflag constant byte address 0x0 - dummy sync flag']
  #allocation14 [shape = 'u32[]', space=smem, size = 0x4, offset = 0x44, fixed_abs, tag = 'smem constant byte address 0x44 - assertion arg 0']
  #allocation15 [shape = 'u32[]', space=smem, size = 0x4, offset = 0x48, fixed_abs, tag = 'smem constant byte address 0x48 - assertion arg 1']
  #allocation16 [shape = 's32[]', space=sflag, size = 0x4, offset = 0, fixed_abs, tag = 'sflag constant byte address 0x0 - dummy sync flag']
  #allocation17 [shape = 's32[]', space=sflag, size = 0x4, offset = 0, fixed_abs, tag = 'sflag constant byte address 0x0 - dummy sync flag']
  #allocation18 [shape = 's32[]', space=sflag, size = 0x4, offset = 0, fixed_abs, tag = 'sflag constant byte address 0x0 - dummy sync flag']
  #allocation19 [shape = 's32[]', space=sflag, size = 0x4, offset = 0, fixed_abs, tag = 'sflag constant byte address 0x0 - dummy sync flag']
  %s0 = inlined_call_operand.hbm [shape: s32[8], index: 0, kind: input, shape index: {}]
  %s1 = inlined_call_operand.vmem [shape: s32[8], index: 1, kind: input, shape index: {}]
  %s2 = inlined_call_operand.vmem [shape: s32[8], index: 2, kind: input, shape index: {}]
  %s3 = inlined_call_operand.hbm [shape: f32[10,32], index: 3, kind: input, shape index: {}]
  %s4 = inlined_call_operand.hbm [shape: f32[20,32], index: 4, kind: input, shape index: {}]
  %s5 = inlined_call_operand.hbm [shape: f32[1,1], index: 5, kind: output, shape index: {}]
  %s6 = sld [smem:[#allocation0]]
  $region36: #{tpu_custom_call.1} parent=0
    _
  %s8 = ssub.s32 1, %s6
  %s9 = scalar_select 0, %s8, %s6
  %11 = dma.hbm_to_smem %s0, 16, [#allocation7], [#allocation6]
  %s12 = sshll.u32 %s1, 4
  %s13 = int_to_ptr.vmem [resolvable:$true] %s12
  %15 = dma.vmem_to_smem %s13, 16, [#allocation8], [#allocation6]
  %s16 = sshll.u32 %s2, 4
  %s17 = int_to_ptr.vmem [resolvable:$true] %s16
  %19 = dma.vmem_to_smem %s17, 16, [#allocation9], [#allocation6]
  %20 = dma.done [#allocation6], 48
  %21 = sfence
  $region1: #{tpu_custom_call.1} parent=0
    #allocation10 [shape = 'u8[512]{0}', space=smem, size = 0x200, scoped, tag = 'output window, operand 0, single buffered']
    #allocation11 [shape = 's32[1]{0}', space=sflag, size = 0x4, scoped, tag = 'scoped memory for tpu_custom_call.1']
    %22 = vsyncpa [#allocation11], 0
    %s23 = smul.u32 0, 8
    loop: start=0, step=1, limit=8
    $region2: #{tpu_custom_call.1} parent=1 // loop_pre_header
      _
    $region3: #{tpu_custom_call.1} parent=1 // loop_header
      %s25 = sphi 0, %s29
      %p26 = scmp.ge.s32.totalorder %s25, 8
    $region4: #{tpu_custom_call.1} parent=1 // loop_header_branch
      %28 = sbr.rel (%p26) target = $region8
    $region5: #{tpu_custom_call.1} parent=1 // loop_body
      %s30 = sadd.s32 %s23, %s25
      %p31 = scmp.lt.s32.totalorder %s30, 7
      %s32 = scalar_select %p31, %s30, 7
      %s33 = sld [smem:[#allocation7 + %s32]]
      %s34 = sld [smem:[#allocation8 + %s32]]
      %s35 = sld [smem:[#allocation9 + %s32]]
      %s36 = smul.addr %s33, 16
      %s37 = scalar_lea.hbm %s3, %s36
      %s38 = scalar_lea.vmem [#allocation2], %s25
      // Predicated region
      $region9: #{tpu_custom_call.1} parent=5 // pred_check
        _
      $region10: #{tpu_custom_call.1} parent=5 // pred_check_branch
        %40 = sbr.rel target = $region12
      $region11: #{tpu_custom_call.1} parent=5 // pred_region
        %41 = sst [smem:[#allocation14]] [#allocation13]
        %42 = sst [smem:[#allocation15]] [#allocation12]
      $region12: #{tpu_custom_call.1} parent=5 // pred_fallthru
        _
      %44 = shalt.err (0)
      %s46 = sshll.u32 %s38, 4
      %s47 = int_to_ptr.vmem [resolvable:$true] %s46
      %49 = dma.hbm_to_vmem [thread:$0]  %s37, 16, %s47, [#allocation5]
      %s50 = smul.addr %s34, 16
      %s51 = scalar_lea.hbm %s4, %s50
      %s52 = scalar_lea.vmem [#allocation3], %s25
      %s53 = scalar_lea.sflag [#allocation5], 1
      // Predicated region
      $region13: #{tpu_custom_call.1} parent=5 // pred_check
        _
      $region14: #{tpu_custom_call.1} parent=5 // pred_check_branch
        %55 = sbr.rel target = $region16
      $region15: #{tpu_custom_call.1} parent=5 // pred_region
        %56 = sst [smem:[#allocation14]] [#allocation17]
        %57 = sst [smem:[#allocation15]] [#allocation16]
      $region16: #{tpu_custom_call.1} parent=5 // pred_fallthru
        _
      %59 = shalt.err (0)
      %s61 = sshll.u32 %s52, 4
      %s62 = int_to_ptr.vmem [resolvable:$true] %s61
      %64 = dma.hbm_to_vmem [thread:$0]  %s51, 16, %s62, %s53
      %s65 = smul.addr %s35, 16
      %s66 = scalar_lea.hbm %s4, %s65
      %s67 = scalar_lea.vmem [#allocation4], %s25
      %s68 = scalar_lea.sflag [#allocation5], 2
      // Predicated region
      $region17: #{tpu_custom_call.1} parent=5 // pred_check
        _
      $region18: #{tpu_custom_call.1} parent=5 // pred_check_branch
        %70 = sbr.rel target = $region20
      $region19: #{tpu_custom_call.1} parent=5 // pred_region
        %71 = sst [smem:[#allocation14]] [#allocation19]
        %72 = sst [smem:[#allocation15]] [#allocation18]
      $region20: #{tpu_custom_call.1} parent=5 // pred_fallthru
        _
      %74 = shalt.err (0)
      %s76 = sshll.u32 %s67, 4
      %s77 = int_to_ptr.vmem [resolvable:$true] %s76
      %79 = dma.hbm_to_vmem [thread:$0]  %s66, 16, %s77, %s68
    $region6: #{tpu_custom_call.1} parent=1 // loop_footer
      %s29 = sadd.s32 1, %s25
    $region7: #{tpu_custom_call.1} parent=1 // loop_footer_branch
      %24 = sbr.rel target = $region3
    $region8: #{tpu_custom_call.1} parent=1 // loop_exit
      _
    loop: start=0, step=1, limit=8
    $region21: #{tpu_custom_call.1} parent=1 // loop_pre_header
      _
    $region22: #{tpu_custom_call.1} parent=1 // loop_header
      %s81 = sphi 0, %s85
      %p82 = scmp.ge.s32.totalorder %s81, 8
    $region23: #{tpu_custom_call.1} parent=1 // loop_header_branch
      %84 = sbr.rel (%p82) target = $region27
    $region24: #{tpu_custom_call.1} parent=1 // loop_body
      %s86 = smul.u32 1, 1
      %s87 = sshll.u32 %s86, 4
      %88 = dma.done [#allocation5], %s87
      %s89 = scalar_lea.sflag [#allocation5], 1
      %s90 = sshll.u32 %s86, 4
      %91 = dma.done %s89, %s90
      %s92 = scalar_lea.sflag [#allocation5], 2
      %s93 = sshll.u32 %s86, 4
      %94 = dma.done %s92, %s93
    $region25: #{tpu_custom_call.1} parent=1 // loop_footer
      %s85 = sadd.s32 1, %s81
    $region26: #{tpu_custom_call.1} parent=1 // loop_footer_branch
      %80 = sbr.rel target = $region22
    $region27: #{tpu_custom_call.1} parent=1 // loop_exit
      _
    %v95 = vld [vmem:[#allocation2] sm:$0xff]
    %v96 = vld [vmem:[#allocation3] sm:$0xff]
    %v97 = vld [vmem:[#allocation4] sm:$0xff]
    %v98 = vsub.f32 %v96, %v97
    %v99 = vmul.f32 %v95, %v98
    %vm100 = vcmask 261120
    %v101 = vsel %vm100, %v99, 0.0
    %102 = vadd.xlane.f32.xlu0 %v101
    %v103 = vpop.xlane.xlu0 %102
    %v104 = vmin.f32 %v103, 0.0
    %v105 = vand.u32 2147483647, %v103
    %v106 = vsub.f32 0.0, %v105
    %v107 = vmul.f32 %v106, 1.442695
    %v108 = vpow.pop %v107
    %v109 = vadd.f32 %v108, 1.0
    %v110 = vlog2.pop %v109
    %v111 = vmul.f32 %v110, 0.6931472
    %v112 = vsub.f32 %v104, %v111
    %v113 = vmul.f32 %v95, %v95
    %v114 = vmul.f32 %v96, %v96
    %v115 = vadd.f32 %v113, %v114
    %v116 = vmul.f32 %v97, %v97
    %v117 = vadd.f32 %v115, %v116
    %v118 = vsel %vm100, %v117, 0.0
    %119 = vadd.xlane.f32.xlu0 %v118
    %v120 = vpop.xlane.xlu0 %119
    %v121 = vmul.f32 %v120, 0.01
    %v122 = vsub.f32 %v112, %v121
    %vm123 = vcmask 7168
    %v124 = vsel %vm123, %v122, 0.0
    %125 = vadd.xlane.f32.xlu0 %v124
    %v126 = vpop.xlane.xlu0 %125
    %v127 = vrot.slane %v126, 4
    %v128 = vadd.f32 %v126, %v127
    %v129 = vrot.slane %v128, 2
    %v130 = vadd.f32 %v128, %v129
    %v131 = vrot.slane %v130, 1
    %v132 = vadd.f32 %v130, %v131
    %s133 = vtos %v132
    %s134 = scalar_lea.smem [#allocation10], 0
    %135 = sst [smem:[%s134]] %s133
    // Predicated region
    $region28: #{tpu_custom_call.1} parent=1 // pred_check
      _
    $region29: #{tpu_custom_call.1} parent=1 // pred_check_branch
      %137 = sbr.rel (0) target = $region31
    $region30: #{tpu_custom_call.1} parent=1 // pred_region
      %s139 = ssub.s32 16, 16
      %140 = vsyncadd [#allocation11], %s139
      %143 = dma.smem_to_hbm [#allocation10], 16, %s5, [#allocation11]
    $region31: #{tpu_custom_call.1} parent=1 // pred_fallthru
      _
    // Predicated region
    $region32: #{tpu_custom_call.1} parent=1 // pred_check
      _
    $region33: #{tpu_custom_call.1} parent=1 // pred_check_branch
      %145 = sbr.rel (0) target = $region35
    $region34: #{tpu_custom_call.1} parent=1 // pred_region
      %146 = dma.done [#allocation11], 16
    $region35: #{tpu_custom_call.1} parent=1 // pred_fallthru
      _
    %147 = sfence
    %148 = vsyncpa [#allocation11], 1
  %149 = vsyncmov [#allocation5]
  %s150 = vpop.sfrf %149
  %p151 = scmp.eq.s32.totalorder %s150, 0
  %p152 = pneg %p151
  %154 = shalt.err (%p152)
  %s155 = scalar_lea.sflag [#allocation5], 1
  %156 = vsyncmov %s155
  %s157 = vpop.sfrf %156
  %p158 = scmp.eq.s32.totalorder %s157, 0
  %p159 = pneg %p158
  %161 = shalt.err (%p159)
  %s162 = scalar_lea.sflag [#allocation5], 2
  %163 = vsyncmov %s162
  %s164 = vpop.sfrf %163
  %p165 = scmp.eq.s32.totalorder %s164, 0
  %p166 = pneg %p165
  %168 = shalt.err (%p166)

</llo_original>
